<compile_context>
chip_gen: v5e
topology: v5e:2x2
jax: 0.10.0
libtpu: 0.0.40
codegen_flags: <defaults>
</compile_context>

<pallas_src>
import jax
import jax.numpy as jnp
from jax import lax
from jax.experimental import pallas as pl
from jax.experimental.pallas import tpu as pltpu


def _make_dwconv_kernel(H, W):
    HW = H * W

    def kernel(x_ref, w_ref, b_ref, m_ref, o_ref):
        # x_ref: (Ct, HW)  activations: Ct channels of one batch element,
        #                  spatial flattened onto the lane axis
        # w_ref: (Ct, 9)   per-channel 3x3 taps, column k = kh*3 + kw
        # b_ref: (Ct, 1)   bias
        # m_ref: (4, HW)   {0,1} edge masks: [left, right, top, bottom]
        # o_ref: (Ct, HW)
        xf = x_ref[...].astype(jnp.float32)          # single upfront cast
        wf = w_ref[...].astype(jnp.float32)
        bf = b_ref[...].astype(jnp.float32)
        m = m_ref[...]

        # Column-shifted slabs: xl[p] = x[h, w-1], xr[p] = x[h, w+1].
        # pltpu.roll follows jnp.roll semantics (result[i] = x[i - shift]);
        # values that wrap across row / image boundaries are zeroed by masks.
        xl = pltpu.roll(xf, 1, axis=1) * m[0:1, :]
        xr = pltpu.roll(xf, HW - 1, axis=1) * m[1:2, :]

        def row_combo(kh):
            # sum over kw of weight[:, kh, kw] * column-shifted slab; the
            # (Ct, 1) weight columns broadcast along the lane (pixel) axis.
            return (wf[:, 3 * kh + 0:3 * kh + 1] * xl
                    + wf[:, 3 * kh + 1:3 * kh + 2] * xf
                    + wf[:, 3 * kh + 2:3 * kh + 3] * xr)

        acc = bf + row_combo(1)                                          # kh=1
        acc = acc + pltpu.roll(row_combo(0), W, axis=1) * m[2:3, :]      # kh=0 (row above)
        acc = acc + pltpu.roll(row_combo(2), HW - W, axis=1) * m[3:4, :]  # kh=2 (row below)

        o_ref[...] = acc.astype(o_ref.dtype)

    return kernel


def _edge_masks(H, W):
    """(4, H*W) float32 {0,1} masks over the flattened spatial axis."""
    p = jnp.arange(H * W, dtype=jnp.int32)
    col = p % W
    left = col >= 1                # tap (.., kw=0) needs w-1 >= 0
    right = col <= W - 2           # tap (.., kw=2) needs w+1 <  W
    top = p >= W                   # tap (kh=0, ..) needs h-1 >= 0
    bot = p < (H - 1) * W          # tap (kh=2, ..) needs h+1 <  H
    return jnp.stack([left, right, top, bot]).astype(jnp.float32)


def _largest_row_tile(C, cap_rows):
    """Largest divisor of C that is a multiple of 8 and <= cap_rows (C % 8 == 0)."""
    start = min(C, max(cap_rows, 8))
    start -= start % 8
    for cand in range(start, 7, -8):
        if C % cand == 0:
            return cand
    return C


def _pick_c_tile(N, C, HW):
    if C % 8 != 0:
        # Small / odd channel counts: one full-C block (block dim == array dim
        # is allowed).  The lane axis (H*W) carries the vector width, so this
        # stays lane-dense.
        return C
    # Keep one f32 working slab (c_tile, HW) around <= 2 MiB: ~6-7 such slabs
    # are live at peak inside the kernel plus double-buffered I/O blocks,
    # which fits scoped VMEM on every generation (incl. v7x's 64 MiB per TC).
    # TODO(synk): very large H*W feature maps would additionally want spatial
    # tiling (with halo handling) instead of shrinking c_tile below 8 rows.
    slab_cap_bytes = 2 * 1024 * 1024
    cap_rows = max(8, slab_cap_bytes // (4 * HW))
    c_tile = _largest_row_tile(C, cap_rows)
    # Megacore (v7x has 2 TensorCores): ensure >= 2 parallel grid points.
    if N * (C // c_tile) < 2 and C >= 16:
        c_tile = _largest_row_tile(C, C // 2)
    return c_tile


def _vmem_limit_bytes():
    # Generation-aware scoped-VMEM budget: ~3/4 of physical VMEM, capped.
    # Fallback 48 MiB is safe on every generation (v7x has 64 MiB per TC).
    try:
        cap = int(pltpu.get_tpu_info().vmem_capacity_bytes)
        return min(cap * 3 // 4, 96 * 1024 * 1024)
    except Exception:
        return 48 * 1024 * 1024


def dwconv(x, weight, bias):
    """Depthwise Conv2d(dim, dim, 3, stride=1, padding=1, groups=dim, bias=True).

    x: (N, C, H, W); weight: (C, 1, 3, 3); bias: (C,).  Returns (N, C, H, W).
    """
    N, C, H, W = x.shape
    HW = H * W

    # Row-major reshapes only (no transpose / pad): zero extra HBM passes.
    x3 = x.reshape(N, C, HW)
    w2 = weight.reshape(C, 9).astype(jnp.float32)   # column k = kh*3 + kw
    b2 = bias.reshape(C, 1).astype(jnp.float32)
    masks = _edge_masks(H, W)

    c_tile = _pick_c_tile(N, C, HW)
    grid = (C // c_tile, N)   # batch innermost -> weight/bias/mask DMAs reused

    out = pl.pallas_call(
        _make_dwconv_kernel(H, W),
        out_shape=jax.ShapeDtypeStruct((N, C, HW), x.dtype),
        grid=grid,
        in_specs=[
            pl.BlockSpec((None, c_tile, HW), lambda c, n: (n, c, 0)),
            pl.BlockSpec((c_tile, 9), lambda c, n: (c, 0)),
            pl.BlockSpec((c_tile, 1), lambda c, n: (c, 0)),
            pl.BlockSpec((4, HW), lambda c, n: (0, 0)),
        ],
        out_specs=pl.BlockSpec((None, c_tile, HW), lambda c, n: (n, c, 0)),
        compiler_params=pltpu.CompilerParams(
            dimension_semantics=("parallel", "parallel"),
            vmem_limit_bytes=_vmem_limit_bytes(),
        ),
    )(x3, w2, b2, masks)

    return out.reshape(N, C, H, W)


def dwconv_ref(x, weight, bias):
    N, C, H, W = x.shape
    out = lax.conv_general_dilated(
        x, weight.reshape(C, 1, 3, 3),
        window_strides=(1, 1), padding=((1, 1), (1, 1)),
        dimension_numbers=('NCHW', 'OIHW', 'NCHW'),
        feature_group_count=C)
    return out + bias.reshape(1, C, 1, 1)


if __name__ == "__main__":
    key = jax.random.PRNGKey(0)
    k1, k2, k3 = jax.random.split(key, 3)

    run = jax.jit(dwconv)

    # DWConv(dim=C) applied to a small NCHW feature map.
    N, C, H, W = 2, 4, 16, 16
    x = jax.random.normal(k1, (N, C, H, W), jnp.float32)
    weight = jax.random.normal(k2, (C, 1, 3, 3), jnp.float32) * 0.1
    bias = jax.random.normal(k3, (C,), jnp.float32) * 0.01

    out = jax.block_until_ready(run(x, weight, bias))
    ref = dwconv_ref(x, weight, bias)
    assert out.shape == (N, C, H, W) and out.dtype == x.dtype
    assert jnp.allclose(out, ref, atol=1e-5, rtol=1e-5), \
        float(jnp.max(jnp.abs(out - ref)))

    # Second shape: exercises the channel-tiled path and the megacore split
    # (N=1 forces c_tile=C//2 so both v7x TensorCores get a grid point).
    N2, C2 = 1, 64
    x2 = jax.random.normal(k1, (N2, C2, H, W), jnp.float32)
    w2_ = jax.random.normal(k2, (C2, 1, 3, 3), jnp.float32) * 0.1
    b2_ = jax.random.normal(k3, (C2,), jnp.float32) * 0.01
    out2 = jax.block_until_ready(run(x2, w2_, b2_))
    ref2 = dwconv_ref(x2, w2_, b2_)
    assert jnp.allclose(out2, ref2, atol=1e-5, rtol=1e-5), \
        float(jnp.max(jnp.abs(out2 - ref2)))

    print("KERNEL_OK")
</pallas_src>

<mosaic_0001>
module attributes {stable_mosaic.version = 11 : i64} {
  func.func @kernel(%arg0: i32, %arg1: i32, %arg2: memref<1x4x256xf32, #tpu.memory_space<vmem>>, %arg3: memref<4x9xf32, #tpu.memory_space<vmem>>, %arg4: memref<4x1xf32, #tpu.memory_space<vmem>>, %arg5: memref<4x256xf32, #tpu.memory_space<vmem>>, %arg6: memref<1x4x256xf32, #tpu.memory_space<vmem>>) attributes {dimension_semantics = [#tpu.dimension_semantics<parallel>, #tpu.dimension_semantics<parallel>], iteration_bounds = array<i64: 1, 2>, scalar_prefetch = 0 : i64, scratch_operands = 0 : i64, tpu.core_type = #tpu.core_type<tc>, window_params = [{transform_indices = @transform_0, window_bounds = array<i64: 1, 4, 256>}, {transform_indices = @transform_1, window_bounds = array<i64: 4, 9>}, {transform_indices = @transform_2, window_bounds = array<i64: 4, 1>}, {pipeline_mode = #tpu.pipeline_mode<synchronous>, transform_indices = @transform_3, window_bounds = array<i64: 4, 256>}, {transform_indices = @transform_4, window_bounds = array<i64: 1, 4, 256>}]} {
    %c0 = arith.constant 0 : index
    %c0_0 = arith.constant 0 : index
    %c0_1 = arith.constant 0 : index
    %0 = vector.load %arg2[%c0, %c0_0, %c0_1] : memref<1x4x256xf32, #tpu.memory_space<vmem>>, vector<1x4x256xf32>
    %1 = vector.shape_cast %0 : vector<1x4x256xf32> to vector<4x256xf32>
    %c0_2 = arith.constant 0 : index
    %c0_3 = arith.constant 0 : index
    %2 = vector.load %arg3[%c0_2, %c0_3] : memref<4x9xf32, #tpu.memory_space<vmem>>, vector<4x9xf32>
    %c0_4 = arith.constant 0 : index
    %c0_5 = arith.constant 0 : index
    %3 = vector.load %arg4[%c0_4, %c0_5] : memref<4x1xf32, #tpu.memory_space<vmem>>, vector<4x1xf32>
    %c0_6 = arith.constant 0 : index
    %c0_7 = arith.constant 0 : index
    %4 = vector.load %arg5[%c0_6, %c0_7] : memref<4x256xf32, #tpu.memory_space<vmem>>, vector<4x256xf32>
    %c1_i32 = arith.constant 1 : i32
    %5 = tpu.dynamic_rotate %1 by %c1_i32 dim 1 : vector<4x256xf32>, i32 -> vector<4x256xf32>
    %6 = vector.extract_strided_slice %4 {offsets = [0, 0], sizes = [1, 256], strides = [1, 1]} : vector<4x256xf32> to vector<1x256xf32>
    %7 = vector.broadcast %6 : vector<1x256xf32> to vector<4x256xf32>
    %8 = arith.mulf %5, %7 : vector<4x256xf32>
    %c255_i32 = arith.constant 255 : i32
    %9 = tpu.dynamic_rotate %1 by %c255_i32 dim 1 : vector<4x256xf32>, i32 -> vector<4x256xf32>
    %10 = vector.extract_strided_slice %4 {offsets = [1, 0], sizes = [1, 256], strides = [1, 1]} : vector<4x256xf32> to vector<1x256xf32>
    %11 = vector.broadcast %10 : vector<1x256xf32> to vector<4x256xf32>
    %12 = arith.mulf %9, %11 : vector<4x256xf32>
    %13 = vector.extract_strided_slice %2 {offsets = [0, 3], sizes = [4, 1], strides = [1, 1]} : vector<4x9xf32> to vector<4x1xf32>
    %14 = vector.broadcast %13 : vector<4x1xf32> to vector<4x256xf32>
    %15 = arith.mulf %14, %8 : vector<4x256xf32>
    %16 = vector.extract_strided_slice %2 {offsets = [0, 4], sizes = [4, 1], strides = [1, 1]} : vector<4x9xf32> to vector<4x1xf32>
    %17 = vector.broadcast %16 : vector<4x1xf32> to vector<4x256xf32>
    %18 = arith.mulf %17, %1 : vector<4x256xf32>
    %19 = arith.addf %15, %18 : vector<4x256xf32>
    %20 = vector.extract_strided_slice %2 {offsets = [0, 5], sizes = [4, 1], strides = [1, 1]} : vector<4x9xf32> to vector<4x1xf32>
    %21 = vector.broadcast %20 : vector<4x1xf32> to vector<4x256xf32>
    %22 = arith.mulf %21, %12 : vector<4x256xf32>
    %23 = arith.addf %19, %22 : vector<4x256xf32>
    %24 = vector.broadcast %3 : vector<4x1xf32> to vector<4x256xf32>
    %25 = arith.addf %24, %23 : vector<4x256xf32>
    %26 = vector.extract_strided_slice %2 {offsets = [0, 0], sizes = [4, 1], strides = [1, 1]} : vector<4x9xf32> to vector<4x1xf32>
    %27 = vector.broadcast %26 : vector<4x1xf32> to vector<4x256xf32>
    %28 = arith.mulf %27, %8 : vector<4x256xf32>
    %29 = vector.extract_strided_slice %2 {offsets = [0, 1], sizes = [4, 1], strides = [1, 1]} : vector<4x9xf32> to vector<4x1xf32>
    %30 = vector.broadcast %29 : vector<4x1xf32> to vector<4x256xf32>
    %31 = arith.mulf %30, %1 : vector<4x256xf32>
    %32 = arith.addf %28, %31 : vector<4x256xf32>
    %33 = vector.extract_strided_slice %2 {offsets = [0, 2], sizes = [4, 1], strides = [1, 1]} : vector<4x9xf32> to vector<4x1xf32>
    %34 = vector.broadcast %33 : vector<4x1xf32> to vector<4x256xf32>
    %35 = arith.mulf %34, %12 : vector<4x256xf32>
    %36 = arith.addf %32, %35 : vector<4x256xf32>
    %c16_i32 = arith.constant 16 : i32
    %37 = tpu.dynamic_rotate %36 by %c16_i32 dim 1 : vector<4x256xf32>, i32 -> vector<4x256xf32>
    %38 = vector.extract_strided_slice %4 {offsets = [2, 0], sizes = [1, 256], strides = [1, 1]} : vector<4x256xf32> to vector<1x256xf32>
    %39 = vector.broadcast %38 : vector<1x256xf32> to vector<4x256xf32>
    %40 = arith.mulf %37, %39 : vector<4x256xf32>
    %41 = arith.addf %25, %40 : vector<4x256xf32>
    %42 = vector.extract_strided_slice %2 {offsets = [0, 6], sizes = [4, 1], strides = [1, 1]} : vector<4x9xf32> to vector<4x1xf32>
    %43 = vector.broadcast %42 : vector<4x1xf32> to vector<4x256xf32>
    %44 = arith.mulf %43, %8 : vector<4x256xf32>
    %45 = vector.extract_strided_slice %2 {offsets = [0, 7], sizes = [4, 1], strides = [1, 1]} : vector<4x9xf32> to vector<4x1xf32>
    %46 = vector.broadcast %45 : vector<4x1xf32> to vector<4x256xf32>
    %47 = arith.mulf %46, %1 : vector<4x256xf32>
    %48 = arith.addf %44, %47 : vector<4x256xf32>
    %49 = vector.extract_strided_slice %2 {offsets = [0, 8], sizes = [4, 1], strides = [1, 1]} : vector<4x9xf32> to vector<4x1xf32>
    %50 = vector.broadcast %49 : vector<4x1xf32> to vector<4x256xf32>
    %51 = arith.mulf %50, %12 : vector<4x256xf32>
    %52 = arith.addf %48, %51 : vector<4x256xf32>
    %c240_i32 = arith.constant 240 : i32
    %53 = tpu.dynamic_rotate %52 by %c240_i32 dim 1 : vector<4x256xf32>, i32 -> vector<4x256xf32>
    %54 = vector.extract_strided_slice %4 {offsets = [3, 0], sizes = [1, 256], strides = [1, 1]} : vector<4x256xf32> to vector<1x256xf32>
    %55 = vector.broadcast %54 : vector<1x256xf32> to vector<4x256xf32>
    %56 = arith.mulf %53, %55 : vector<4x256xf32>
    %57 = arith.addf %41, %56 : vector<4x256xf32>
    %c0_8 = arith.constant 0 : index
    %c0_9 = arith.constant 0 : index
    %c0_10 = arith.constant 0 : index
    %58 = vector.load %arg6[%c0_8, %c0_9, %c0_10] : memref<1x4x256xf32, #tpu.memory_space<vmem>>, vector<1x4x256xf32>
    %59 = vector.shape_cast %58 : vector<1x4x256xf32> to vector<4x256xf32>
    %60 = vector.shape_cast %57 : vector<4x256xf32> to vector<1x4x256xf32>
    tpu.vector_store %arg6[%c0_8, %c0_9, %c0_10], %60 {strides = array<i32>} : memref<1x4x256xf32, #tpu.memory_space<vmem>>, vector<1x4x256xf32>,
    return
  }
  func.func @transform_0(%arg0: i32, %arg1: i32) -> (i32, i32, i32) {
    %c0_i32 = arith.constant 0 : i32
    %c0_i32_0 = arith.constant 0 : i32
    return %arg1, %arg0, %c0_i32 : i32, i32, i32
  }
  func.func @transform_1(%arg0: i32, %arg1: i32) -> (i32, i32) {
    %c0_i32 = arith.constant 0 : i32
    %c0_i32_0 = arith.constant 0 : i32
    return %arg0, %c0_i32 : i32, i32
  }
  func.func @transform_2(%arg0: i32, %arg1: i32) -> (i32, i32) {
    %c0_i32 = arith.constant 0 : i32
    %c0_i32_0 = arith.constant 0 : i32
    return %arg0, %c0_i32 : i32, i32
  }
  func.func @transform_3(%arg0: i32, %arg1: i32) -> (i32, i32) {
    %c0_i32 = arith.constant 0 : i32
    %c0_i32_0 = arith.constant 0 : i32
    %c0_i32_1 = arith.constant 0 : i32
    return %c0_i32, %c0_i32_0 : i32, i32
  }
  func.func @transform_4(%arg0: i32, %arg1: i32) -> (i32, i32, i32) {
    %c0_i32 = arith.constant 0 : i32
    %c0_i32_0 = arith.constant 0 : i32
    return %arg1, %arg0, %c0_i32 : i32, i32, i32
  }
}

</mosaic_0001>

<llo_original>
// kernel: dwconv.1
$region0: #{dwconv.1}
  #allocation0 [shape = 'u32[]', space=smem, size = 0x4, offset = 0x4, fixed_abs, tag = 'smem constant byte address 0x4 - core index']
  #allocation1 [shape = 'u32[72,128]{1,0:T(1,128)}', space=vmem, size = 0x9000, scoped, tag = 'internal scratch']
  %s0 = inlined_call_operand.vmem [shape: f32[2,4,256], index: 0, kind: input, shape index: {}]
  %s1 = inlined_call_operand.vmem [shape: f32[4,9], index: 1, kind: input, shape index: {}]
  %s2 = inlined_call_operand.vmem [shape: f32[4,1], index: 2, kind: input, shape index: {}]
  %s3 = inlined_call_operand.vmem [shape: f32[4,256], index: 3, kind: input, shape index: {}]
  %s4 = inlined_call_operand.vmem [shape: f32[2,4,256], index: 4, kind: output, shape index: {}]
  %s5 = sld [smem:[#allocation0]]
  $region49: #{dwconv.1} parent=0
    _
  %s7 = ssub.s32 1, %s5
  %s8 = scalar_select 0, %s7, %s5
  loop: start=0, step=1, limit=4
  $region2: #{dwconv.1} parent=0 // loop_pre_header
    _
  $region3: #{dwconv.1} parent=0 // loop_header
    %s10 = sphi 0, %s14
    %p11 = scmp.ge.s32.totalorder %s10, 4
    %s17 = sphi 0, %s29
    %s18 = sphi 0, %s25
    %s19 = sphi 0, %s17
    %s20 = sphi 0, %s18
    %s21 = sphi 0, %s19
    %s22 = sphi 0, %s20
    %s34 = sphi 0, %s36
    %s37 = sphi 0, %s34
    %s38 = sphi 0, %s37
    %s54 = sphi 0, %s38
    %s60 = sphi 0, %s62
    %s63 = sphi 0, %s60
    %s64 = sphi 0, %s63
    %s80 = sphi 0, %s64
    %s86 = sphi 0, %s88
    %s89 = sphi 0, %s86
    %s90 = sphi 0, %s89
    %s106 = sphi 0, %s90
    %s110 = sphi 0, %s110
    %s112 = sphi 0, %s110
    %s113 = sphi 0, %s112
    %s127 = sphi 0, %s113
    %s135 = sphi 0, %s137
    %s138 = sphi 0, %s135
    %s139 = sphi 0, %s138
    %s155 = sphi 0, %s139
  $region4: #{dwconv.1} parent=0 // loop_header_branch
    %13 = sbr.rel (%p11) target = $region8
  $region5: #{dwconv.1} parent=0 // loop_body
    %s15 = ssub.s32 %s10, 1
    %s16 = ssub.s32 %s10, 2
    %s23 = sadd.s32 1, %s18
    %p24 = scmp.ge.s32.totalorder %s23, 2
    %s25 = scalar_select %p24, 0, %s23
    %s26 = sadd.s32 1, %s17
    %s27 = scalar_select %p24, %s26, %s17
    %p28 = scmp.ge.s32.totalorder %s27, 1
    %s29 = scalar_select %p28, 0, %s27
    %s30 = ssub.s32 %s18, %s25
    %s31 = ssub.s32 %s17, %s29
    %s32 = sor.u32 %s30, %s31
    %p33 = scmp.eq.s32.totalorder %s32, 0
    %s35 = sadd.s32 %s34, 1
    %s36 = scalar_select %p33, %s34, %s35
    %p39 = pneg %p33
    %p40 = scmp.eq.s32.totalorder %s10, 1
    %p41 = por %p39, %p40
    %p42 = scmp.ne.s32.totalorder %s34, %s37
    %p43 = scmp.eq.s32.totalorder %s10, 0
    %p44 = por %p42, %p43
    %p45 = scmp.ne.s32.totalorder %s34, %s37
    %p46 = scmp.eq.s32.totalorder %s15, 1
    %p47 = por %p45, %p46
    %p48 = scmp.ne.s32.totalorder %s37, %s38
    %p49 = scmp.eq.s32.totalorder %s15, 0
    %p50 = por %p48, %p49
    %p51 = scmp.ne.s32.totalorder %s37, %s38
    %p52 = scmp.eq.s32.totalorder %s16, 1
    %p53 = por %p51, %p52
    %p55 = scmp.ne.s32.totalorder %s38, %s54
    %p56 = scmp.eq.s32.totalorder %s16, 0
    %p57 = por %p55, %p56
    %s58 = ssub.s32 %s17, %s29
    %p59 = scmp.eq.s32.totalorder %s58, 0
    %s61 = sadd.s32 %s60, 1
    %s62 = scalar_select %p59, %s60, %s61
    %p65 = pneg %p59
    %p66 = scmp.eq.s32.totalorder %s10, 1
    %p67 = por %p65, %p66
    %p68 = scmp.ne.s32.totalorder %s60, %s63
    %p69 = scmp.eq.s32.totalorder %s10, 0
    %p70 = por %p68, %p69
    %p71 = scmp.ne.s32.totalorder %s60, %s63
    %p72 = scmp.eq.s32.totalorder %s15, 1
    %p73 = por %p71, %p72
    %p74 = scmp.ne.s32.totalorder %s63, %s64
    %p75 = scmp.eq.s32.totalorder %s15, 0
    %p76 = por %p74, %p75
    %p77 = scmp.ne.s32.totalorder %s63, %s64
    %p78 = scmp.eq.s32.totalorder %s16, 1
    %p79 = por %p77, %p78
    %p81 = scmp.ne.s32.totalorder %s64, %s80
    %p82 = scmp.eq.s32.totalorder %s16, 0
    %p83 = por %p81, %p82
    %s84 = ssub.s32 %s17, %s29
    %p85 = scmp.eq.s32.totalorder %s84, 0
    %s87 = sadd.s32 %s86, 1
    %s88 = scalar_select %p85, %s86, %s87
    %p91 = pneg %p85
    %p92 = scmp.eq.s32.totalorder %s10, 1
    %p93 = por %p91, %p92
    %p94 = scmp.ne.s32.totalorder %s86, %s89
    %p95 = scmp.eq.s32.totalorder %s10, 0
    %p96 = por %p94, %p95
    %p97 = scmp.ne.s32.totalorder %s86, %s89
    %p98 = scmp.eq.s32.totalorder %s15, 1
    %p99 = por %p97, %p98
    %p100 = scmp.ne.s32.totalorder %s89, %s90
    %p101 = scmp.eq.s32.totalorder %s15, 0
    %p102 = por %p100, %p101
    %p103 = scmp.ne.s32.totalorder %s89, %s90
    %p104 = scmp.eq.s32.totalorder %s16, 1
    %p105 = por %p103, %p104
    %p107 = scmp.ne.s32.totalorder %s90, %s106
    %p108 = scmp.eq.s32.totalorder %s16, 0
    %p109 = por %p107, %p108
    %s111 = sadd.s32 %s110, 1
    %p114 = scmp.eq.s32.totalorder %s10, 1
    %p115 = scmp.ne.s32.totalorder %s110, %s112
    %p116 = scmp.eq.s32.totalorder %s10, 0
    %p117 = por %p115, %p116
    %p118 = scmp.ne.s32.totalorder %s110, %s112
    %p119 = scmp.eq.s32.totalorder %s15, 1
    %p120 = por %p118, %p119
    %p121 = scmp.ne.s32.totalorder %s112, %s113
    %p122 = scmp.eq.s32.totalorder %s15, 0
    %p123 = por %p121, %p122
    %p124 = scmp.ne.s32.totalorder %s112, %s113
    %p125 = scmp.eq.s32.totalorder %s16, 1
    %p126 = por %p124, %p125
    %p128 = scmp.ne.s32.totalorder %s113, %s127
    %p129 = scmp.eq.s32.totalorder %s16, 0
    %p130 = por %p128, %p129
    %s131 = ssub.s32 %s18, %s25
    %s132 = ssub.s32 %s17, %s29
    %s133 = sor.u32 %s131, %s132
    %p134 = scmp.eq.s32.totalorder %s133, 0
    %s136 = sadd.s32 %s135, 1
    %s137 = scalar_select %p134, %s135, %s136
    %p140 = pneg %p134
    %p141 = scmp.eq.s32.totalorder %s10, 1
    %p142 = por %p140, %p141
    %p143 = scmp.ne.s32.totalorder %s135, %s138
    %p144 = scmp.eq.s32.totalorder %s10, 0
    %p145 = por %p143, %p144
    %p146 = scmp.ne.s32.totalorder %s135, %s138
    %p147 = scmp.eq.s32.totalorder %s15, 1
    %p148 = por %p146, %p147
    %p149 = scmp.ne.s32.totalorder %s138, %s139
    %p150 = scmp.eq.s32.totalorder %s15, 0
    %p151 = por %p149, %p150
    %p152 = scmp.ne.s32.totalorder %s138, %s139
    %p153 = scmp.eq.s32.totalorder %s16, 1
    %p154 = por %p152, %p153
    %p156 = scmp.ne.s32.totalorder %s139, %s155
    %p157 = scmp.eq.s32.totalorder %s16, 0
    %p158 = por %p156, %p157
    %p159 = scmp.le.s32.totalorder 1, %s10
    %p160 = scmp.lt.s32.totalorder %s10, 3
    %p161 = pnand %p159, %p160
    %p162 = pneg %p161
    // Predicated region
    $region9: #{dwconv.1} parent=5 // pred_check
      _
    $region10: #{dwconv.1} parent=5 // pred_check_branch
      %164 = sbr.rel (%p161) target = $region12
    $region11: #{dwconv.1} parent=5 // pred_region
      %s165 = ssub.s32 %s10, 1
      // Predicated region
      $region13: #{dwconv.1} parent=11 // pred_check
        %p166 = pneg %p76
      $region14: #{dwconv.1} parent=11 // pred_check_branch
        %168 = sbr.rel (%p166) target = $region16
      $region15: #{dwconv.1} parent=11 // pred_region
        %p169 = scmp.lt.s32.totalorder %s19, 0
        %s170 = scalar_select %p169, %s19, 0
        %s171 = smul.addr %s170, 4
        %s172 = scalar_lea.vmem %s1, %s171
      $region16: #{dwconv.1} parent=11 // pred_fallthru
        _
      // Predicated region
      $region17: #{dwconv.1} parent=11 // pred_check
        %p173 = pneg %p102
      $region18: #{dwconv.1} parent=11 // pred_check_branch
        %175 = sbr.rel (%p173) target = $region20
      $region19: #{dwconv.1} parent=11 // pred_region
        %p176 = scmp.lt.s32.totalorder %s19, 0
        %s177 = scalar_select %p176, %s19, 0
        %s178 = smul.addr %s177, 4
        %s179 = scalar_lea.vmem %s2, %s178
      $region20: #{dwconv.1} parent=11 // pred_fallthru
        _
      // Predicated region
      $region21: #{dwconv.1} parent=11 // pred_check
        %p180 = pneg %p123
      $region22: #{dwconv.1} parent=11 // pred_check_branch
        %182 = sbr.rel (%p180) target = $region24
      $region23: #{dwconv.1} parent=11 // pred_region
        _
      $region24: #{dwconv.1} parent=11 // pred_fallthru
        _
    $region12: #{dwconv.1} parent=5 // pred_fallthru
      _
    %p183 = scmp.lt.s32.totalorder %s10, 2
    // Predicated region
    $region25: #{dwconv.1} parent=5 // pred_check
      %p184 = pneg %p183
    $region26: #{dwconv.1} parent=5 // pred_check_branch
      %186 = sbr.rel (%p184) target = $region28
    $region27: #{dwconv.1} parent=5 // pred_region
      // Predicated region
      $region29: #{dwconv.1} parent=27 // pred_check
        %p187 = pneg %p44
      $region30: #{dwconv.1} parent=27 // pred_check_branch
        %189 = sbr.rel (%p187) target = $region32
      $region31: #{dwconv.1} parent=27 // pred_region
        %p190 = scmp.lt.s32.totalorder %s18, 1
        %s191 = scalar_select %p190, %s18, 1
        %p192 = scmp.lt.s32.totalorder %s17, 0
        %s193 = scalar_select %p192, %s17, 0
        %s194 = smul.addr %s193, 2
        %s195 = smul.addr %s191, 2
        %s196 = sadd.s32 %s194, %s195
        %s197 = smul.addr %s196, 4
        %s198 = scalar_lea.vmem %s0, %s197
      $region32: #{dwconv.1} parent=27 // pred_fallthru
        _
    $region28: #{dwconv.1} parent=5 // pred_fallthru
      _
    %p199 = scmp.le.s32.totalorder 1, %s10
    %p200 = scmp.lt.s32.totalorder %s10, 3
    %p201 = pnand %p199, %p200
    %p202 = pneg %p201
    // Predicated region
    $region33: #{dwconv.1} parent=5 // pred_check
      _
    $region34: #{dwconv.1} parent=5 // pred_check_branch
      %204 = sbr.rel (%p201) target = $region36
    $region35: #{dwconv.1} parent=5 // pred_region
      %s205 = ssub.s32 %s10, 1
      %p206 = scmp.lt.s32.totalorder %s20, 1
      %s207 = scalar_select %p206, %s20, 1
      %p208 = scmp.lt.s32.totalorder %s19, 0
      %s209 = scalar_select %p208, %s19, 0
      %s210 = smul.addr %s209, 2
      %s211 = smul.addr %s207, 2
      %s212 = sadd.s32 %s210, %s211
      %s213 = smul.addr %s212, 4
      %s214 = scalar_lea.vmem %s0, %s213
      %p215 = pneg %p50
      %p216 = pneg %p47
      %p217 = scmp.lt.s32.totalorder %s19, 0
      %s218 = scalar_select %p217, %s19, 0
      %s219 = smul.addr %s218, 4
      %s220 = scalar_lea.vmem %s1, %s219
      %p221 = pneg %p76
      %p222 = pneg %p73
      %p223 = scmp.lt.s32.totalorder %s19, 0
      %s224 = scalar_select %p223, %s19, 0
      %s225 = smul.addr %s224, 4
      %s226 = scalar_lea.vmem %s2, %s225
      %p227 = pneg %p102
      %p228 = pneg %p99
      %p229 = pneg %p123
      %p230 = pneg %p120
      %p231 = pneg %p151
      %p232 = pneg %p148
      %p233 = scmp.lt.s32.totalorder %s20, 1
      %s234 = scalar_select %p233, %s20, 1
      %p235 = scmp.lt.s32.totalorder %s19, 0
      %s236 = scalar_select %p235, %s19, 0
      %s237 = smul.addr %s236, 2
      %s238 = smul.addr %s234, 2
      %s239 = sadd.s32 %s237, %s238
      %s240 = smul.addr %s239, 4
      %s241 = scalar_lea.vmem %s4, %s240
      %p242 = scmp.lt.s32.totalorder %s20, 1
      %s243 = scalar_select %p242, %s20, 1
      %p244 = scmp.lt.s32.totalorder %s19, 0
      %s245 = scalar_select %p244, %s19, 0
      %s246 = smul.addr %s245, 2
      %s247 = smul.addr %s243, 2
      %s248 = sadd.s32 %s246, %s247
      %s249 = smul.addr %s248, 4
      %s250 = scalar_lea.vmem %s0, %s249
      %p251 = scmp.lt.s32.totalorder %s19, 0
      %s252 = scalar_select %p251, %s19, 0
      %s253 = smul.addr %s252, 4
      %s254 = scalar_lea.vmem %s1, %s253
      %p255 = scmp.lt.s32.totalorder %s19, 0
      %s256 = scalar_select %p255, %s19, 0
      %s257 = smul.addr %s256, 4
      %s258 = scalar_lea.vmem %s2, %s257
      %p259 = scmp.lt.s32.totalorder %s20, 1
      %s260 = scalar_select %p259, %s20, 1
      %p261 = scmp.lt.s32.totalorder %s19, 0
      %s262 = scalar_select %p261, %s19, 0
      %s263 = smul.addr %s262, 2
      %s264 = smul.addr %s260, 2
      %s265 = sadd.s32 %s263, %s264
      %s266 = smul.addr %s265, 4
      %s267 = scalar_lea.vmem %s4, %s266
      %v268 = vld [vmem:[%s250] sm:$0xff]
      %v269 = vld [vmem:[%s254] sm:$0xf]
      %v270 = vld [vmem:[%s258] sm:$0xf]
      %v271 = vld [vmem:[%s3] sm:$0xff]
      %273 = vst [vmem:[#allocation1] ss:$2 sm:$0xff] %v268
      %v274 = vld.sshfl [vmem:[#allocation1] sm:$0xff pattern:$0x75316420]
      %v275 = vld.sshfl [vmem:[#allocation1 + $0x8] sm:$0xff pattern:$0x75316420]
      %278 = vrot.lane.b32.xlu0 %v274, 1
      %v279 = vpop.permute.xlu0 %278
      %280 = vrot.lane.b32.xlu0 %v275, 1
      %v281 = vpop.permute.xlu0 %280
      %v282 = vlaneseq
      %v283 = vand.u32 %v282, 127
      %vm284 = vcmp.lt.s32.totalorder %v283, 1
      %v285 = vsel %vm284, %v279, %v281
      %v286 = vsel %vm284, %v281, %v279
      %v288 = vperm.slane %v271, 0
      %v289 = vperm.slane %v271, 4
      %v292 = vperm.slane %v288, 0
      %v293 = vperm.slane %v289, 0
      %v294 = vmul.f32 %v286, %v292
      %v295 = vmul.f32 %v285, %v293
      %296 = vst [vmem:[#allocation1] ss:$2 sm:$0xff] %v268
      %v297 = vld.sshfl [vmem:[#allocation1] sm:$0xff pattern:$0x75316420]
      %v298 = vld.sshfl [vmem:[#allocation1 + $0x8] sm:$0xff pattern:$0x75316420]
      %301 = vrot.lane.b32.xlu0 %v297, 127
      %v302 = vpop.permute.xlu0 %301
      %303 = vrot.lane.b32.xlu0 %v298, 127
      %v304 = vpop.permute.xlu0 %303
      %vm305 = vcmp.lt.s32.totalorder %v283, 127
      %v306 = vsel %vm305, %v302, %v304
      %v307 = vsel %vm305, %v304, %v302
      %v308 = vperm.slane %v271, 1
      %v309 = vperm.slane %v271, 5
      %v312 = vperm.slane %v308, 1
      %v313 = vperm.slane %v309, 1
      %v314 = vmul.f32 %v306, %v312
      %v315 = vmul.f32 %v307, %v313
      %317 = vset.pattern.permute.xlu0 3
      %318 = vperm.xlu0 %317, %v269
      %v319 = vpop.permute.xlu0 %318
      %v321 = vmul.f32 %v319, %v294
      %v322 = vmul.f32 %v319, %v295
      %323 = vset.pattern.permute.xlu0 4
      %324 = vperm.xlu0 %323, %v269
      %v325 = vpop.permute.xlu0 %324
      %327 = vst [vmem:[#allocation1] ss:$2 sm:$0xff] %v268
      %v328 = vld.sshfl [vmem:[#allocation1] sm:$0xff pattern:$0x75316420]
      %v329 = vld.sshfl [vmem:[#allocation1 + $0x8] sm:$0xff pattern:$0x75316420]
      %v332 = vmul.f32 %v325, %v328
      %v333 = vmul.f32 %v325, %v329
      %v334 = vadd.f32 %v321, %v332
      %v335 = vadd.f32 %v322, %v333
      %336 = vset.pattern.permute.xlu0 5
      %337 = vperm.xlu0 %336, %v269
      %v338 = vpop.permute.xlu0 %337
      %v340 = vmul.f32 %v338, %v314
      %v341 = vmul.f32 %v338, %v315
      %v342 = vadd.f32 %v334, %v340
      %v343 = vadd.f32 %v335, %v341
      %345 = vset.pattern.permute.xlu0 0
      %346 = vperm.xlu0 %345, %v270
      %v347 = vpop.permute.xlu0 %346
      %v349 = vadd.f32 %v347, %v342
      %v350 = vadd.f32 %v347, %v343
      %351 = vset.pattern.permute.xlu0 0
      %352 = vperm.xlu0 %351, %v269
      %v353 = vpop.permute.xlu0 %352
      %v355 = vmul.f32 %v353, %v294
      %v356 = vmul.f32 %v353, %v295
      %357 = vset.pattern.permute.xlu0 1
      %358 = vperm.xlu0 %357, %v269
      %v359 = vpop.permute.xlu0 %358
      %361 = vst [vmem:[#allocation1] ss:$2 sm:$0xff] %v268
      %v362 = vld.sshfl [vmem:[#allocation1] sm:$0xff pattern:$0x75316420]
      %v363 = vld.sshfl [vmem:[#allocation1 + $0x8] sm:$0xff pattern:$0x75316420]
      %v366 = vmul.f32 %v359, %v362
      %v367 = vmul.f32 %v359, %v363
      %v368 = vadd.f32 %v355, %v366
      %v369 = vadd.f32 %v356, %v367
      %370 = vset.pattern.permute.xlu0 2
      %371 = vperm.xlu0 %370, %v269
      %v372 = vpop.permute.xlu0 %371
      %v374 = vmul.f32 %v372, %v314
      %v375 = vmul.f32 %v372, %v315
      %v376 = vadd.f32 %v368, %v374
      %v377 = vadd.f32 %v369, %v375
      %378 = vrot.lane.b32.xlu0 %v376, 16
      %v379 = vpop.permute.xlu0 %378
      %380 = vrot.lane.b32.xlu0 %v377, 16
      %v381 = vpop.permute.xlu0 %380
      %vm382 = vcmp.lt.s32.totalorder %v283, 16
      %v383 = vsel %vm382, %v379, %v381
      %v384 = vsel %vm382, %v381, %v379
      %v385 = vperm.slane %v271, 2
      %v386 = vperm.slane %v271, 6
      %v389 = vperm.slane %v385, 2
      %v390 = vperm.slane %v386, 2
      %v391 = vmul.f32 %v384, %v389
      %v392 = vmul.f32 %v383, %v390
      %v393 = vadd.f32 %v349, %v391
      %v394 = vadd.f32 %v350, %v392
      %395 = vset.pattern.permute.xlu0 6
      %396 = vperm.xlu0 %395, %v269
      %v397 = vpop.permute.xlu0 %396
      %v399 = vmul.f32 %v397, %v294
      %v400 = vmul.f32 %v397, %v295
      %401 = vset.pattern.permute.xlu0 7
      %402 = vperm.xlu0 %401, %v269
      %v403 = vpop.permute.xlu0 %402
      %405 = vst [vmem:[#allocation1] ss:$2 sm:$0xff] %v268
      %v406 = vld.sshfl [vmem:[#allocation1] sm:$0xff pattern:$0x75316420]
      %v407 = vld.sshfl [vmem:[#allocation1 + $0x8] sm:$0xff pattern:$0x75316420]
      %v410 = vmul.f32 %v403, %v406
      %v411 = vmul.f32 %v403, %v407
      %v412 = vadd.f32 %v399, %v410
      %v413 = vadd.f32 %v400, %v411
      %414 = vset.pattern.permute.xlu0 8
      %415 = vperm.xlu0 %414, %v269
      %v416 = vpop.permute.xlu0 %415
      %v418 = vmul.f32 %v416, %v314
      %v419 = vmul.f32 %v416, %v315
      %v420 = vadd.f32 %v412, %v418
      %v421 = vadd.f32 %v413, %v419
      %422 = vrot.lane.b32.xlu0 %v420, 112
      %v423 = vpop.permute.xlu0 %422
      %424 = vrot.lane.b32.xlu0 %v421, 112
      %v425 = vpop.permute.xlu0 %424
      %vm426 = vcmp.lt.s32.totalorder %v283, 112
      %v427 = vsel %vm426, %v423, %v425
      %v428 = vsel %vm426, %v425, %v423
      %v429 = vperm.slane %v271, 3
      %v430 = vperm.slane %v271, 7
      %v433 = vperm.slane %v429, 3
      %v434 = vperm.slane %v430, 3
      %v435 = vmul.f32 %v427, %v433
      %v436 = vmul.f32 %v428, %v434
      %v437 = vadd.f32 %v393, %v435
      %v438 = vadd.f32 %v394, %v436
      %v441 = vrot.slane %v438, 4
      %vm442 = vcmask 1043456
      %v443 = vsel %vm442, %v437, %v441
      %445 = vst [vmem:[%s267] sm:$0xff] %v443
      %p446 = scmp.lt.s32.totalorder %s20, 1
      %s447 = scalar_select %p446, %s20, 1
      %p448 = scmp.lt.s32.totalorder %s19, 0
      %s449 = scalar_select %p448, %s19, 0
      %s450 = smul.addr %s449, 2
      %s451 = smul.addr %s447, 2
      %s452 = sadd.s32 %s450, %s451
      %s453 = smul.addr %s452, 4
      %s454 = scalar_lea.vmem %s4, %s453
      // Predicated region
      $region37: #{dwconv.1} parent=35 // pred_check
        %p455 = pneg %p148
      $region38: #{dwconv.1} parent=35 // pred_check_branch
        %457 = sbr.rel (%p455) target = $region40
      $region39: #{dwconv.1} parent=35 // pred_region
        _
      $region40: #{dwconv.1} parent=35 // pred_fallthru
        _
    $region36: #{dwconv.1} parent=5 // pred_fallthru
      _
    %p458 = scmp.le.s32.totalorder 2, %s10
    // Predicated region
    $region41: #{dwconv.1} parent=5 // pred_check
      %p459 = pneg %p458
    $region42: #{dwconv.1} parent=5 // pred_check_branch
      %461 = sbr.rel (%p459) target = $region44
    $region43: #{dwconv.1} parent=5 // pred_region
      %s462 = ssub.s32 %s10, 2
      // Predicated region
      $region45: #{dwconv.1} parent=43 // pred_check
        %p463 = pneg %p154
      $region46: #{dwconv.1} parent=43 // pred_check_branch
        %465 = sbr.rel (%p463) target = $region48
      $region47: #{dwconv.1} parent=43 // pred_region
        %p466 = scmp.lt.s32.totalorder %s22, 1
        %s467 = scalar_select %p466, %s22, 1
        %p468 = scmp.lt.s32.totalorder %s21, 0
        %s469 = scalar_select %p468, %s21, 0
        %s470 = smul.addr %s469, 2
        %s471 = smul.addr %s467, 2
        %s472 = sadd.s32 %s470, %s471
        %s473 = smul.addr %s472, 4
        %s474 = scalar_lea.vmem %s4, %s473
      $region48: #{dwconv.1} parent=43 // pred_fallthru
        _
    $region44: #{dwconv.1} parent=5 // pred_fallthru
      _
  $region6: #{dwconv.1} parent=0 // loop_footer
    %s14 = sadd.s32 1, %s10
  $region7: #{dwconv.1} parent=0 // loop_footer_branch
    %9 = sbr.rel target = $region3
  $region8: #{dwconv.1} parent=0 // loop_exit
    _

</llo_original>
